<compile_context>
chip_gen: v5e
topology: v5e:2x2
jax: 0.10.0
libtpu: 0.0.40
codegen_flags: <defaults>
</compile_context>

<pallas_src>
import jax
import jax.numpy as jnp
import numpy as np
from jax import lax
from jax.experimental import pallas as pl
from jax.experimental.pallas import tpu as pltpu

# ---- hyperparameters (small, consistent with MADE_b.__init__) ----
Q = 4
L = 3
N = Q * (2 * L - 1)          # n = 20
G = N // Q                   # 5 autoregressive groups
NET_DEPTH = 3
NET_WIDTH = 1                # must be 1 (see note above)
BATCH = 2


# ----------------- fused Pallas kernel -----------------
def made_fused_kernel(x_ref, w_ref, p_ref, seg_ref, out_ref):
    """MaskedLinear -> PReLU -> MaskedLinear -> PReLU -> MaskedLinear -> per-group softmax."""
    x = x_ref[...]                                            # (TB, N)

    p = p_ref[...]                                            # (7, N)
    b1, a1 = p[0:1, :], p[1:2, :]
    b2, a2 = p[2:3, :], p[3:4, :]
    b3 = p[4:5, :]
    pair_hi = p[5:6, :] > 0.5     # column j has (j % 2) == 0 -> pair partner is j+1
    quad_lo = p[6:7, :] > 0.5     # column j has (j % 4) <  2 -> quad partner is j+2

    # Layer 1 (mask already folded; weights stored (in, out) -> no transpose)
    h = jnp.dot(x, w_ref[0], preferred_element_type=jnp.float32) + b1
    h = jnp.where(h > 0, h, a1 * h)                           # PReLU (one select)

    # Layer 2
    h = jnp.dot(h, w_ref[1], preferred_element_type=jnp.float32) + b2
    h = jnp.where(h > 0, h, a2 * h)

    # Layer 3 -> logits (TB, N)
    z = jnp.dot(h, w_ref[2], preferred_element_type=jnp.float32) + b3

    # ---- per-group softmax (groups = consecutive blocks of Q=4 columns) ----
    # Group max via a 2-round masked butterfly, staying in the lane-dense
    # (TB, N) layout.  pltpu.roll matches jnp.roll: result[j] = x[(j-shift)%N];
    # shift = N-1 fetches the value from column j+1, shift = 1 from j-1.
    nxt1 = pltpu.roll(z, N - 1, 1)                            # value from column j+1
    prv1 = pltpu.roll(z, 1, 1)                                # value from column j-1
    y = jnp.maximum(z, jnp.where(pair_hi, nxt1, prv1))        # max over pair {j & ~1, j | 1}
    nxt2 = pltpu.roll(y, N - 2, 1)                            # value from column j+2
    prv2 = pltpu.roll(y, 2, 1)                                # value from column j-2
    gmax = jnp.maximum(y, jnp.where(quad_lo, nxt2, prv2))     # per-column group max (TB, N)

    e = jnp.exp(z - gmax)                                     # (TB, N), args <= 0 -> no overflow
    # per-group sums via block-diagonal aggregation matmul (seg is a resident constant)
    denom = jnp.dot(e, seg_ref[...], preferred_element_type=jnp.float32)
    out_ref[...] = e / denom                                  # exact normalization


# ----------------- wrapper (glue: pack params, reshape only) -----------------
def pack_params(params):
    """Fold masks into weights, pre-transpose to (in, out), pack constants."""
    m1, w1, b1, a1, m2, w2, b2, a2, m3, w3, b3 = params
    wp = jnp.stack([(m1 * w1).T, (m2 * w2).T, (m3 * w3).T], axis=0).astype(jnp.float32)

    col = np.arange(N)
    pair_hi = (col % 2 == 0).astype(np.float32)               # butterfly round-1 mask
    quad_lo = (col % Q < Q // 2).astype(np.float32)           # butterfly round-2 mask
    pp = jnp.stack([jnp.asarray(b1).reshape(-1), jnp.asarray(a1).reshape(-1),
                    jnp.asarray(b2).reshape(-1), jnp.asarray(a2).reshape(-1),
                    jnp.asarray(b3).reshape(-1),
                    jnp.asarray(pair_hi), jnp.asarray(quad_lo)],
                   axis=0).astype(jnp.float32)                # (7, N)

    # block-diagonal group-sum matrix: seg[k, j] = 1 iff k // Q == j // Q
    seg = jnp.asarray(np.kron(np.eye(G, dtype=np.float32),
                              np.ones((Q, Q), dtype=np.float32)))
    return wp, pp, seg                                        # (3,N,N), (7,N), (N,N)


def _choose_batch_tile(B):
    """Batch tile: big (amortize ~0.35us/step) but >=4 steps for v7x megacore."""
    if B <= 512:
        return B                       # one block; block_shape == full dims is allowed
    tb = ((pl.cdiv(B, 4) + 7) // 8) * 8   # >=4 grid steps, 8-aligned (sublane rule)
    # Cap at 8192 rows: double-buffered in+out blocks ~2.6 MiB -> safe under the
    # v5e 16 MiB scoped-VMEM default and the v7x 64 MiB physical VMEM.
    return min(tb, 8192)


def made_b_forward(x, wp, pp, seg):
    """Equivalent of MADE_b.forward(x, Q). x: any shape with leading batch dim."""
    B = x.shape[0]
    x2d = x.reshape(B, -1).astype(jnp.float32)                # x.view(B, -1)

    tb = _choose_batch_tile(B)
    grid = (pl.cdiv(B, tb),)

    cost = pl.CostEstimate(
        flops=int(B) * (4 * 2 * N * N + 8 * N),
        transcendentals=int(B) * N,
        bytes_accessed=int(B) * N * 4 * 2 + (3 * N * N + 7 * N + N * N) * 4,
    )

    out = pl.pallas_call(
        made_fused_kernel,
        out_shape=jax.ShapeDtypeStruct((B, N), jnp.float32),
        grid_spec=pltpu.PrefetchScalarGridSpec(
            num_scalar_prefetch=0,
            grid=grid,
            in_specs=[
                pl.BlockSpec((tb, N), lambda i: (i, 0)),       # activations (batch-tiled)
                pl.BlockSpec((3, N, N), lambda i: (0, 0, 0)),  # folded weights (resident)
                pl.BlockSpec((7, N), lambda i: (0, 0)),        # bias / PReLU / butterfly masks
                pl.BlockSpec((N, N), lambda i: (0, 0)),        # group-sum matrix (resident)
            ],
            out_specs=pl.BlockSpec((tb, N), lambda i: (i, 0)),
        ),
        compiler_params=pltpu.CompilerParams(
            dimension_semantics=("parallel",)),
        cost_estimate=cost,
    )(x2d, wp, pp, seg)

    # view(B, 1, n/Q, Q); softmax already applied in-kernel
    return out.reshape(B, 1, G, Q)


# ----------------- deterministic parameter construction -----------------
def build_mask(exclusive):
    base = np.ones((G, G), dtype=np.float32)
    base = (1.0 - np.triu(base)) if exclusive else np.tril(base)
    # expand each group entry to a Q x Q block (the mask_tmp loop in MaskedLinear)
    return np.kron(base, np.ones((Q, Q), dtype=np.float32))


def init_masked_linear(key, exclusive):
    mask = build_mask(exclusive)
    kw, kb = jax.random.split(key)
    bound = 1.0 / np.sqrt(N)                                  # nn.Linear default bound
    w = jax.random.uniform(kw, (N, N), jnp.float32, -bound, bound)
    w = w * jnp.asarray(mask) * np.sqrt(mask.size / mask.sum())  # weight *= mask; *= sqrt(numel/sum)
    b = jax.random.uniform(kb, (1, N), jnp.float32, -bound, bound)
    return jnp.asarray(mask), w, b


def ref_forward(x, params):
    """Pure-JAX reference matching the PyTorch module's forward."""
    m1, w1, b1, a1, m2, w2, b2, a2, m3, w3, b3 = params
    B = x.shape[0]
    h = x.reshape(B, -1).astype(jnp.float32)
    h = h @ (m1 * w1).T + b1
    h = jnp.maximum(h, 0.0) + a1 * jnp.minimum(h, 0.0)
    h = h @ (m2 * w2).T + b2
    h = jnp.maximum(h, 0.0) + a2 * jnp.minimum(h, 0.0)
    z = h @ (m3 * w3).T + b3
    return jax.nn.softmax(z.reshape(B, 1, G, Q), axis=3)


if __name__ == "__main__":
    key = jax.random.PRNGKey(0)
    k1, k2, k3, kx = jax.random.split(key, 4)

    m1, w1, b1 = init_masked_linear(k1, exclusive=True)   # first MaskedLinear
    m2, w2, b2 = init_masked_linear(k2, exclusive=False)  # middle block MaskedLinear
    m3, w3, b3 = init_masked_linear(k3, exclusive=False)  # final block MaskedLinear
    a1 = jnp.full((1, N), 0.5, jnp.float32)                # PReLU weights (init=0.5)
    a2 = jnp.full((1, N), 0.5, jnp.float32)
    params = (m1, w1, b1, a1, m2, w2, b2, a2, m3, w3, b3)
    wp, pp, seg = pack_params(params)

    # input shaped like a sample: (batch, 1, n/Q, Q)
    x = jax.random.uniform(kx, (BATCH, 1, G, Q), dtype=jnp.float32)

    x_hat = made_b_forward(x, wp, pp, seg)
    jax.block_until_ready(x_hat)

    assert x_hat.shape == (BATCH, 1, G, Q)
    # per-group probabilities sum to 1 (exact normalization now -> tight tolerance)
    assert np.allclose(np.asarray(x_hat).sum(axis=-1), 1.0, atol=1e-4)
    # match the unfused pure-JAX reference
    ref = np.asarray(ref_forward(x, params))
    assert np.allclose(np.asarray(x_hat), ref, atol=2e-4)
    print("KERNEL_OK")
</pallas_src>

<mosaic_0001>
module attributes {stable_mosaic.version = 11 : i64} {
  func.func @made_fused_kernel(%arg0: i32, %arg1: memref<2x20xf32, #tpu.memory_space<vmem>>, %arg2: memref<3x20x20xf32, #tpu.memory_space<vmem>>, %arg3: memref<7x20xf32, #tpu.memory_space<vmem>>, %arg4: memref<20x20xf32, #tpu.memory_space<vmem>>, %arg5: memref<2x20xf32, #tpu.memory_space<vmem>>) attributes {dimension_semantics = [#tpu.dimension_semantics<parallel>], iteration_bounds = array<i64: 1>, scalar_prefetch = 0 : i64, scratch_operands = 0 : i64, tpu.core_type = #tpu.core_type<tc>, window_params = [{transform_indices = @transform_0, window_bounds = array<i64: 2, 20>}, {pipeline_mode = #tpu.pipeline_mode<synchronous>, transform_indices = @transform_1, window_bounds = array<i64: 3, 20, 20>}, {pipeline_mode = #tpu.pipeline_mode<synchronous>, transform_indices = @transform_2, window_bounds = array<i64: 7, 20>}, {pipeline_mode = #tpu.pipeline_mode<synchronous>, transform_indices = @transform_3, window_bounds = array<i64: 20, 20>}, {transform_indices = @transform_4, window_bounds = array<i64: 2, 20>}]} {
    %c0 = arith.constant 0 : index
    %c0_0 = arith.constant 0 : index
    %0 = vector.load %arg1[%c0, %c0_0] : memref<2x20xf32, #tpu.memory_space<vmem>>, vector<2x20xf32>
    %c0_1 = arith.constant 0 : index
    %c0_2 = arith.constant 0 : index
    %1 = vector.load %arg3[%c0_1, %c0_2] : memref<7x20xf32, #tpu.memory_space<vmem>>, vector<7x20xf32>
    %2 = vector.extract_strided_slice %1 {offsets = [0, 0], sizes = [1, 20], strides = [1, 1]} : vector<7x20xf32> to vector<1x20xf32>
    %3 = vector.extract_strided_slice %1 {offsets = [1, 0], sizes = [1, 20], strides = [1, 1]} : vector<7x20xf32> to vector<1x20xf32>
    %4 = vector.extract_strided_slice %1 {offsets = [2, 0], sizes = [1, 20], strides = [1, 1]} : vector<7x20xf32> to vector<1x20xf32>
    %5 = vector.extract_strided_slice %1 {offsets = [3, 0], sizes = [1, 20], strides = [1, 1]} : vector<7x20xf32> to vector<1x20xf32>
    %6 = vector.extract_strided_slice %1 {offsets = [4, 0], sizes = [1, 20], strides = [1, 1]} : vector<7x20xf32> to vector<1x20xf32>
    %7 = vector.extract_strided_slice %1 {offsets = [5, 0], sizes = [1, 20], strides = [1, 1]} : vector<7x20xf32> to vector<1x20xf32>
    %cst = arith.constant 5.000000e-01 : f32
    %8 = vector.broadcast %cst : f32 to vector<1x20xf32>
    %9 = arith.cmpf ogt, %7, %8 : vector<1x20xf32>
    %10 = vector.extract_strided_slice %1 {offsets = [6, 0], sizes = [1, 20], strides = [1, 1]} : vector<7x20xf32> to vector<1x20xf32>
    %cst_3 = arith.constant 5.000000e-01 : f32
    %11 = vector.broadcast %cst_3 : f32 to vector<1x20xf32>
    %12 = arith.cmpf ogt, %10, %11 : vector<1x20xf32>
    %c0_4 = arith.constant 0 : index
    %c0_5 = arith.constant 0 : index
    %c0_6 = arith.constant 0 : index
    %13 = vector.load %arg2[%c0_4, %c0_5, %c0_6] : memref<3x20x20xf32, #tpu.memory_space<vmem>>, vector<1x20x20xf32>
    %14 = vector.shape_cast %13 : vector<1x20x20xf32> to vector<20x20xf32>
    %cst_7 = arith.constant dense<0.000000e+00> : vector<2x20xf32>
    %15 = tpu.matmul %0, %14, %cst_7 {dimension_numbers = #tpu.dot_dimension_numbers<[1], [0], [0], [1], [0, 0, 1, 1], [], []>} : vector<2x20xf32>, vector<20x20xf32>, vector<2x20xf32> -> vector<2x20xf32>
    %16 = vector.broadcast %2 : vector<1x20xf32> to vector<2x20xf32>
    %17 = arith.addf %15, %16 : vector<2x20xf32>
    %cst_8 = arith.constant 0.000000e+00 : f32
    %18 = vector.broadcast %cst_8 : f32 to vector<2x20xf32>
    %19 = arith.cmpf ogt, %17, %18 : vector<2x20xf32>
    %20 = vector.broadcast %3 : vector<1x20xf32> to vector<2x20xf32>
    %21 = arith.mulf %20, %17 : vector<2x20xf32>
    %22 = arith.select %19, %17, %21 : vector<2x20xi1>, vector<2x20xf32>
    %c1 = arith.constant 1 : index
    %c0_9 = arith.constant 0 : index
    %c0_10 = arith.constant 0 : index
    %23 = vector.load %arg2[%c1, %c0_9, %c0_10] : memref<3x20x20xf32, #tpu.memory_space<vmem>>, vector<1x20x20xf32>
    %24 = vector.shape_cast %23 : vector<1x20x20xf32> to vector<20x20xf32>
    %cst_11 = arith.constant dense<0.000000e+00> : vector<2x20xf32>
    %25 = tpu.matmul %22, %24, %cst_11 {dimension_numbers = #tpu.dot_dimension_numbers<[1], [0], [0], [1], [0, 0, 1, 1], [], []>} : vector<2x20xf32>, vector<20x20xf32>, vector<2x20xf32> -> vector<2x20xf32>
    %26 = vector.broadcast %4 : vector<1x20xf32> to vector<2x20xf32>
    %27 = arith.addf %25, %26 : vector<2x20xf32>
    %cst_12 = arith.constant 0.000000e+00 : f32
    %28 = vector.broadcast %cst_12 : f32 to vector<2x20xf32>
    %29 = arith.cmpf ogt, %27, %28 : vector<2x20xf32>
    %30 = vector.broadcast %5 : vector<1x20xf32> to vector<2x20xf32>
    %31 = arith.mulf %30, %27 : vector<2x20xf32>
    %32 = arith.select %29, %27, %31 : vector<2x20xi1>, vector<2x20xf32>
    %c2 = arith.constant 2 : index
    %c0_13 = arith.constant 0 : index
    %c0_14 = arith.constant 0 : index
    %33 = vector.load %arg2[%c2, %c0_13, %c0_14] : memref<3x20x20xf32, #tpu.memory_space<vmem>>, vector<1x20x20xf32>
    %34 = vector.shape_cast %33 : vector<1x20x20xf32> to vector<20x20xf32>
    %cst_15 = arith.constant dense<0.000000e+00> : vector<2x20xf32>
    %35 = tpu.matmul %32, %34, %cst_15 {dimension_numbers = #tpu.dot_dimension_numbers<[1], [0], [0], [1], [0, 0, 1, 1], [], []>} : vector<2x20xf32>, vector<20x20xf32>, vector<2x20xf32> -> vector<2x20xf32>
    %36 = vector.broadcast %6 : vector<1x20xf32> to vector<2x20xf32>
    %37 = arith.addf %35, %36 : vector<2x20xf32>
    %c19_i32 = arith.constant 19 : i32
    %38 = tpu.dynamic_rotate %37 by %c19_i32 dim 1 : vector<2x20xf32>, i32 -> vector<2x20xf32>
    %c1_i32 = arith.constant 1 : i32
    %39 = tpu.dynamic_rotate %37 by %c1_i32 dim 1 : vector<2x20xf32>, i32 -> vector<2x20xf32>
    %40 = vector.shape_cast %9 : vector<1x20xi1> to vector<1x20xi1>
    %41 = vector.broadcast %40 : vector<1x20xi1> to vector<2x20xi1>
    %42 = arith.select %41, %38, %39 : vector<2x20xi1>, vector<2x20xf32>
    %43 = arith.maximumf %37, %42 : vector<2x20xf32>
    %c18_i32 = arith.constant 18 : i32
    %44 = tpu.dynamic_rotate %43 by %c18_i32 dim 1 : vector<2x20xf32>, i32 -> vector<2x20xf32>
    %c2_i32 = arith.constant 2 : i32
    %45 = tpu.dynamic_rotate %43 by %c2_i32 dim 1 : vector<2x20xf32>, i32 -> vector<2x20xf32>
    %46 = vector.shape_cast %12 : vector<1x20xi1> to vector<1x20xi1>
    %47 = vector.broadcast %46 : vector<1x20xi1> to vector<2x20xi1>
    %48 = arith.select %47, %44, %45 : vector<2x20xi1>, vector<2x20xf32>
    %49 = arith.maximumf %43, %48 : vector<2x20xf32>
    %50 = arith.subf %37, %49 : vector<2x20xf32>
    %51 = math.exp %50 : vector<2x20xf32>
    %c0_16 = arith.constant 0 : index
    %c0_17 = arith.constant 0 : index
    %52 = vector.load %arg4[%c0_16, %c0_17] : memref<20x20xf32, #tpu.memory_space<vmem>>, vector<20x20xf32>
    %cst_18 = arith.constant dense<0.000000e+00> : vector<2x20xf32>
    %53 = tpu.matmul %51, %52, %cst_18 {dimension_numbers = #tpu.dot_dimension_numbers<[1], [0], [0], [1], [0, 0, 1, 1], [], []>} : vector<2x20xf32>, vector<20x20xf32>, vector<2x20xf32> -> vector<2x20xf32>
    %54 = arith.divf %51, %53 : vector<2x20xf32>
    %c0_19 = arith.constant 0 : index
    %c0_20 = arith.constant 0 : index
    %55 = vector.load %arg5[%c0_19, %c0_20] : memref<2x20xf32, #tpu.memory_space<vmem>>, vector<2x20xf32>
    tpu.vector_store %arg5[%c0_19, %c0_20], %54 {strides = array<i32>} : memref<2x20xf32, #tpu.memory_space<vmem>>, vector<2x20xf32>,
    return
  }
  func.func @transform_0(%arg0: i32) -> (i32, i32) {
    %c0_i32 = arith.constant 0 : i32
    %c0_i32_0 = arith.constant 0 : i32
    return %arg0, %c0_i32 : i32, i32
  }
  func.func @transform_1(%arg0: i32) -> (i32, i32, i32) {
    %c0_i32 = arith.constant 0 : i32
    %c0_i32_0 = arith.constant 0 : i32
    %c0_i32_1 = arith.constant 0 : i32
    %c0_i32_2 = arith.constant 0 : i32
    return %c0_i32, %c0_i32_0, %c0_i32_1 : i32, i32, i32
  }
  func.func @transform_2(%arg0: i32) -> (i32, i32) {
    %c0_i32 = arith.constant 0 : i32
    %c0_i32_0 = arith.constant 0 : i32
    %c0_i32_1 = arith.constant 0 : i32
    return %c0_i32, %c0_i32_0 : i32, i32
  }
  func.func @transform_3(%arg0: i32) -> (i32, i32) {
    %c0_i32 = arith.constant 0 : i32
    %c0_i32_0 = arith.constant 0 : i32
    %c0_i32_1 = arith.constant 0 : i32
    return %c0_i32, %c0_i32_0 : i32, i32
  }
  func.func @transform_4(%arg0: i32) -> (i32, i32) {
    %c0_i32 = arith.constant 0 : i32
    %c0_i32_0 = arith.constant 0 : i32
    return %arg0, %c0_i32 : i32, i32
  }
}

</mosaic_0001>

<llo_original>
// kernel: tpu_custom_call.1
$region0: #{tpu_custom_call.1}
  #allocation0 [shape = 'u32[]', space=smem, size = 0x4, offset = 0x4, fixed_abs, tag = 'smem constant byte address 0x4 - core index']
  #allocation1 [shape = 'u32[72,128]{1,0:T(1,128)}', space=vmem, size = 0x9000, scoped, tag = 'internal scratch']
  %s0 = inlined_call_operand.hbm [shape: f32[2,20], index: 0, kind: input, shape index: {}]
  %s1 = inlined_call_operand.hbm [shape: f32[3,20,20], index: 1, kind: input, shape index: {}]
  %s2 = inlined_call_operand.hbm [shape: f32[7,20], index: 2, kind: input, shape index: {}]
  %s3 = inlined_call_operand.hbm [shape: f32[20,20], index: 3, kind: input, shape index: {}]
  %s4 = inlined_call_operand.hbm [shape: f32[2,20], index: 4, kind: output, shape index: {}]
  %s5 = sld [smem:[#allocation0]]
  $region42: #{tpu_custom_call.1} parent=0
    _
  %s7 = ssub.s32 1, %s5
  %s8 = scalar_select 0, %s7, %s5
  $region1: #{tpu_custom_call.1} parent=0
    #allocation2 [shape = 'u8[1024]{0}', space=vmem, size = 0x400, scoped, tag = 'input window, operand 0, single buffered']
    #allocation3 [shape = 's32[1]{0}', space=sflag, size = 0x4, scoped, tag = 'scoped memory for tpu_custom_call.1']
    #allocation4 [shape = 's32[1]{0}', space=sflag, size = 0x4, scoped, tag = 'scoped memory for tpu_custom_call.1']
    #allocation5 [shape = 'u8[36864]{0}', space=vmem, size = 0x9000, scoped, tag = 'input window, operand 1, single buffered']
    #allocation6 [shape = 's32[1]{0}', space=sflag, size = 0x4, scoped, tag = 'scoped memory for tpu_custom_call.1']
    #allocation7 [shape = 'u8[4096]{0}', space=vmem, size = 0x1000, scoped, tag = 'input window, operand 2, single buffered']
    #allocation8 [shape = 'u8[12288]{0}', space=vmem, size = 0x3000, scoped, tag = 'input window, operand 3, single buffered']
    #allocation9 [shape = 's32[1]{0}', space=sflag, size = 0x4, scoped, tag = 'scoped memory for tpu_custom_call.1']
    #allocation10 [shape = 'u8[1024]{0}', space=vmem, size = 0x400, scoped, tag = 'output window, operand 0, single buffered']
    %9 = vsyncpa [#allocation3], 0
    %10 = vsyncpa [#allocation6], 0
    %11 = vsyncpa [#allocation9], 0
    %12 = vsyncpa [#allocation4], 0
    // Predicated region
    $region2: #{tpu_custom_call.1} parent=1 // pred_check
      _
    $region3: #{tpu_custom_call.1} parent=1 // pred_check_branch
      %14 = sbr.rel (0) target = $region5
    $region4: #{tpu_custom_call.1} parent=1 // pred_region
      %16 = vsyncadd [#allocation3], 0
      %s18 = sshll.u32 %s0, 4
      %s19 = int_to_ptr.hbm [resolvable:$true] %s18
      %s20 = sshll.u32 [#allocation2], 4
      %s21 = int_to_ptr.vmem [resolvable:$true] %s20
      %23 = dma.hbm_to_vmem [thread:$0]  %s19, 32, %s21, [#allocation3]
    $region5: #{tpu_custom_call.1} parent=1 // pred_fallthru
      _
    // Predicated region
    $region6: #{tpu_custom_call.1} parent=1 // pred_check
      _
    $region7: #{tpu_custom_call.1} parent=1 // pred_check_branch
      %25 = sbr.rel (0) target = $region9
    $region8: #{tpu_custom_call.1} parent=1 // pred_region
      %27 = vsyncadd [#allocation6], 0
      %s28 = sshll.u32 %s1, 4
      %s29 = int_to_ptr.hbm [resolvable:$true] %s28
      %s30 = sshll.u32 [#allocation5], 4
      %s31 = int_to_ptr.vmem [resolvable:$true] %s30
      %36 = dma.hbm_to_vmem [thread:$0]  %s29, 1152, %s31, [#allocation6], 128, 128, 8
    $region9: #{tpu_custom_call.1} parent=1 // pred_fallthru
      _
    // Predicated region
    $region10: #{tpu_custom_call.1} parent=1 // pred_check
      _
    $region11: #{tpu_custom_call.1} parent=1 // pred_check_branch
      %38 = sbr.rel (0) target = $region13
    $region12: #{tpu_custom_call.1} parent=1 // pred_region
      %40 = vsyncadd [#allocation6], 0
      %s42 = sshll.u32 %s2, 4
      %s43 = int_to_ptr.hbm [resolvable:$true] %s42
      %s44 = sshll.u32 [#allocation7], 4
      %s45 = int_to_ptr.vmem [resolvable:$true] %s44
      %47 = dma.hbm_to_vmem [thread:$0]  %s43, 128, %s45, [#allocation6]
    $region13: #{tpu_custom_call.1} parent=1 // pred_fallthru
      _
    // Predicated region
    $region14: #{tpu_custom_call.1} parent=1 // pred_check
      _
    $region15: #{tpu_custom_call.1} parent=1 // pred_check_branch
      %49 = sbr.rel (0) target = $region17
    $region16: #{tpu_custom_call.1} parent=1 // pred_region
      %51 = vsyncadd [#allocation9], 0
      %s52 = sshll.u32 %s3, 4
      %s53 = int_to_ptr.hbm [resolvable:$true] %s52
      %s54 = sshll.u32 [#allocation8], 4
      %s55 = int_to_ptr.vmem [resolvable:$true] %s54
      %60 = dma.hbm_to_vmem [thread:$0]  %s53, 384, %s55, [#allocation9], 128, 128, 8
    $region17: #{tpu_custom_call.1} parent=1 // pred_fallthru
      _
    // Predicated region
    $region18: #{tpu_custom_call.1} parent=1 // pred_check
      _
    $region19: #{tpu_custom_call.1} parent=1 // pred_check_branch
      %62 = sbr.rel (0) target = $region21
    $region20: #{tpu_custom_call.1} parent=1 // pred_region
      %64 = dma.done [#allocation3], 32
    $region21: #{tpu_custom_call.1} parent=1 // pred_fallthru
      _
    // Predicated region
    $region22: #{tpu_custom_call.1} parent=1 // pred_check
      _
    $region23: #{tpu_custom_call.1} parent=1 // pred_check_branch
      %66 = sbr.rel (0) target = $region25
    $region24: #{tpu_custom_call.1} parent=1 // pred_region
      %68 = dma.done [#allocation6], 1152
    $region25: #{tpu_custom_call.1} parent=1 // pred_fallthru
      _
    // Predicated region
    $region26: #{tpu_custom_call.1} parent=1 // pred_check
      _
    $region27: #{tpu_custom_call.1} parent=1 // pred_check_branch
      %70 = sbr.rel (0) target = $region29
    $region28: #{tpu_custom_call.1} parent=1 // pred_region
      %72 = dma.done [#allocation6], 128
    $region29: #{tpu_custom_call.1} parent=1 // pred_fallthru
      _
    // Predicated region
    $region30: #{tpu_custom_call.1} parent=1 // pred_check
      _
    $region31: #{tpu_custom_call.1} parent=1 // pred_check_branch
      %74 = sbr.rel (0) target = $region33
    $region32: #{tpu_custom_call.1} parent=1 // pred_region
      %76 = dma.done [#allocation9], 384
    $region33: #{tpu_custom_call.1} parent=1 // pred_fallthru
      _
    %v77 = vld [vmem:[#allocation2] sm:$0x3]
    %v78 = vld [vmem:[#allocation7] sm:$0x7f]
    %vm79 = vcmp.gt.f32.partialorder %v78, 0.5
    %v80 = vld [vmem:[#allocation5] sm:$0xff]
    %v81 = vld [vmem:[#allocation5 + $0x8] sm:$0xff]
    %v82 = vld [vmem:[#allocation5 + $0x10] sm:$0xf]
    %v83 = vperm.slane %v78, 0
    %vm84 = vcmask 162816
    %v86 = vsel %vm84, %v77, 0
    %vm88 = vcmask 1043456
    %v90 = vsel %vm88, %v82, 0
    %92 = vmatpush.msra.mxu0 0.0
    %93 = vmatpush.msra.mxu0 0.0
    %94 = vmatpush.msra.mxu0 0.0
    %95 = vmatpush.msra.mxu0 0.0
    %96 = vmatpush.msra.mxu0 0.0
    %97 = vmatpush.msra.mxu0 0.0
    %98 = vmatpush.msra.mxu0 0.0
    %99 = vmatpush.msra.mxu0 0.0
    %100 = vmatpush.msra.mxu0 0.0
    %101 = vmatpush.msra.mxu0 0.0
    %102 = vmatpush.msra.mxu0 0.0
    %103 = vmatpush.msra.mxu0 0.0
    %104 = vmatpush.msra.mxu0 0.0
    %105 = vmatpush.msra.mxu0 %v90
    %106 = vmatpush.msra.mxu0 %v81
    %107 = vmatpush.msra.mxu0 %v80
    %108 = vmatmul.f32.gmra.mxu0 %v86
    %v109 = vpop.f32.mrf.mxu0
    %v110 = vadd.f32 %v83, %v109
    %111 = vdwg.mxu0
    %vm112 = vcmp.gt.f32.partialorder %v110, 0.0
    %v113 = vperm.slane %v78, 1
    %v114 = vmul.f32 %v113, %v110
    %v115 = vsel %vm112, %v110, %v114
    %s116 = scalar_lea.vmem [#allocation5], 24
    %v117 = vld [vmem:[%s116] sm:$0xff]
    %v118 = vld [vmem:[%s116 + $0x8] sm:$0xff]
    %v119 = vld [vmem:[%s116 + $0x10] sm:$0xf]
    %v120 = vperm.slane %v78, 2
    %v122 = vsel %vm84, %v115, 0
    %v125 = vsel %vm88, %v119, 0
    %127 = vmatpush.msra.mxu0 0.0
    %128 = vmatpush.msra.mxu0 0.0
    %129 = vmatpush.msra.mxu0 0.0
    %130 = vmatpush.msra.mxu0 0.0
    %131 = vmatpush.msra.mxu0 0.0
    %132 = vmatpush.msra.mxu0 0.0
    %133 = vmatpush.msra.mxu0 0.0
    %134 = vmatpush.msra.mxu0 0.0
    %135 = vmatpush.msra.mxu0 0.0
    %136 = vmatpush.msra.mxu0 0.0
    %137 = vmatpush.msra.mxu0 0.0
    %138 = vmatpush.msra.mxu0 0.0
    %139 = vmatpush.msra.mxu0 0.0
    %140 = vmatpush.msra.mxu0 %v125
    %141 = vmatpush.msra.mxu0 %v118
    %142 = vmatpush.msra.mxu0 %v117
    %143 = vmatmul.f32.gmra.mxu0 %v122
    %v144 = vpop.f32.mrf.mxu0
    %v145 = vadd.f32 %v120, %v144
    %146 = vdwg.mxu0
    %vm147 = vcmp.gt.f32.partialorder %v145, 0.0
    %v148 = vperm.slane %v78, 3
    %v149 = vmul.f32 %v148, %v145
    %v150 = vsel %vm147, %v145, %v149
    %s151 = scalar_lea.vmem [#allocation5], 48
    %v152 = vld [vmem:[%s151] sm:$0xff]
    %v153 = vld [vmem:[%s151 + $0x8] sm:$0xff]
    %v154 = vld [vmem:[%s151 + $0x10] sm:$0xf]
    %v155 = vperm.slane %v78, 4
    %v157 = vsel %vm84, %v150, 0
    %v160 = vsel %vm88, %v154, 0
    %162 = vmatpush.msra.mxu0 0.0
    %163 = vmatpush.msra.mxu0 0.0
    %164 = vmatpush.msra.mxu0 0.0
    %165 = vmatpush.msra.mxu0 0.0
    %166 = vmatpush.msra.mxu0 0.0
    %167 = vmatpush.msra.mxu0 0.0
    %168 = vmatpush.msra.mxu0 0.0
    %169 = vmatpush.msra.mxu0 0.0
    %170 = vmatpush.msra.mxu0 0.0
    %171 = vmatpush.msra.mxu0 0.0
    %172 = vmatpush.msra.mxu0 0.0
    %173 = vmatpush.msra.mxu0 0.0
    %174 = vmatpush.msra.mxu0 0.0
    %175 = vmatpush.msra.mxu0 %v160
    %176 = vmatpush.msra.mxu0 %v153
    %177 = vmatpush.msra.mxu0 %v152
    %178 = vmatmul.f32.gmra.mxu0 %v157
    %v179 = vpop.f32.mrf.mxu0
    %v180 = vadd.f32 %v155, %v179
    %181 = vdwg.mxu0
    %vm182 = vcmask 1047712
    %183 = vrot.lane.b32.xlu0 %v180, 20
    %v184 = vpop.permute.xlu0 %183
    %v185 = vsel %vm182, %v184, %v180
    %186 = vrot.lane.b32.xlu0 %v185, 20
    %v187 = vpop.permute.xlu0 %186
    %v188 = vsel %vm182, %v187, %v180
    %v189 = vsel %vm79, 1, 0
    %v190 = vperm.slane %v189, 5
    %vm191 = vcmp.eq.s32.totalorder %v190, 1
    %193 = vrot.lane.b32.xlu0 %v188, 127
    %v194 = vpop.permute.xlu0 %193
    %196 = vrot.lane.b32.xlu0 %v188, 109
    %v197 = vpop.permute.xlu0 %196
    %v199 = vsel %vm191, %v194, %v197
    %v200 = vmax.f32 %v180, %v199
    %201 = vrot.lane.b32.xlu0 %v200, 20
    %v202 = vpop.permute.xlu0 %201
    %v203 = vsel %vm182, %v202, %v200
    %204 = vrot.lane.b32.xlu0 %v203, 20
    %v205 = vpop.permute.xlu0 %204
    %v206 = vsel %vm182, %v205, %v200
    %v207 = vperm.slane %v189, 6
    %vm208 = vcmp.eq.s32.totalorder %v207, 1
    %210 = vrot.lane.b32.xlu0 %v206, 126
    %v211 = vpop.permute.xlu0 %210
    %213 = vrot.lane.b32.xlu0 %v206, 110
    %v214 = vpop.permute.xlu0 %213
    %v216 = vsel %vm208, %v211, %v214
    %v217 = vmax.f32 %v200, %v216
    %v218 = vsub.f32 %v180, %v217
    %v219 = vmul.f32 %v218, 1.442695
    %v220 = vpow.pop %v219
    %v221 = vld [vmem:[#allocation8] sm:$0xff]
    %v222 = vld [vmem:[#allocation8 + $0x8] sm:$0xff]
    %v223 = vld [vmem:[#allocation8 + $0x10] sm:$0xf]
    %v225 = vsel %vm84, %v220, 0
    %v228 = vsel %vm88, %v223, 0
    %230 = vmatpush.msra.mxu0 0.0
    %231 = vmatpush.msra.mxu0 0.0
    %232 = vmatpush.msra.mxu0 0.0
    %233 = vmatpush.msra.mxu0 0.0
    %234 = vmatpush.msra.mxu0 0.0
    %235 = vmatpush.msra.mxu0 0.0
    %236 = vmatpush.msra.mxu0 0.0
    %237 = vmatpush.msra.mxu0 0.0
    %238 = vmatpush.msra.mxu0 0.0
    %239 = vmatpush.msra.mxu0 0.0
    %240 = vmatpush.msra.mxu0 0.0
    %241 = vmatpush.msra.mxu0 0.0
    %242 = vmatpush.msra.mxu0 0.0
    %243 = vmatpush.msra.mxu0 %v228
    %244 = vmatpush.msra.mxu0 %v222
    %245 = vmatpush.msra.mxu0 %v221
    %246 = vmatmul.f32.gmra.mxu0 %v225
    %v247 = vpop.f32.mrf.mxu0
    %v248 = vadd.f32 0.0, %v247
    %249 = vdwg.mxu0
    %v250 = vrcp.pop %v248
    %v251 = vmul.f32 %v248, %v250
    %v252 = vsub.f32 1.0, %v251
    %v253 = vmul.f32 %v250, %v252
    %v254 = vadd.f32 %v250, %v253
    %vm255 = vweird.f32 %v248
    %vm256 = vweird.f32 %v250
    %vm257 = vmor %vm255, %vm256
    %v258 = vsel %vm257, %v250, %v254
    %v259 = vand.u32 2147483647, %v248
    %vm260 = vcmp.eq.f32.partialorder %v259, 8.507059e+37
    %v261 = vand.u32 %v248, 2147483648
    %v262 = vor.u32 1.1754944e-38, %v261
    %v263 = vsel %vm260, %v262, %v258
    %v264 = vmul.f32 %v220, %v263
    %vm265 = vcmask 156672
    %266 = vst.msk [vmem:[#allocation10] sm:$0x3] %vm265, %v264
    // Predicated region
    $region34: #{tpu_custom_call.1} parent=1 // pred_check
      _
    $region35: #{tpu_custom_call.1} parent=1 // pred_check_branch
      %268 = sbr.rel (0) target = $region37
    $region36: #{tpu_custom_call.1} parent=1 // pred_region
      %270 = vsyncadd [#allocation4], 0
      %s272 = sshll.u32 [#allocation10], 4
      %s273 = int_to_ptr.vmem [resolvable:$true] %s272
      %s274 = sshll.u32 %s4, 4
      %s275 = int_to_ptr.hbm [resolvable:$true] %s274
      %277 = dma.vmem_to_hbm [thread:$0]  %s273, 32, %s275, [#allocation4]
    $region37: #{tpu_custom_call.1} parent=1 // pred_fallthru
      _
    // Predicated region
    $region38: #{tpu_custom_call.1} parent=1 // pred_check
      _
    $region39: #{tpu_custom_call.1} parent=1 // pred_check_branch
      %279 = sbr.rel (0) target = $region41
    $region40: #{tpu_custom_call.1} parent=1 // pred_region
      %281 = dma.done [#allocation4], 32
    $region41: #{tpu_custom_call.1} parent=1 // pred_fallthru
      _
    %282 = vsyncpa [#allocation3], 1
    %283 = vsyncpa [#allocation6], 1
    %284 = vsyncpa [#allocation9], 1
    %285 = vsyncpa [#allocation4], 1

</llo_original>
